<compile_context>
chip_gen: v5e
topology: v5e:2x2
jax: 0.10.0
libtpu: 0.0.40
codegen_flags: <defaults>
</compile_context>

<pallas_src>
import functools

import jax
import jax.numpy as jnp
from jax.experimental import pallas as pl
from jax.experimental.pallas import tpu as pltpu

EPS = 1e-6  # matches F.pairwise_distance default eps


def _cauchy_pair_kernel(zi_ref, zj_ref, out_ref):
    # zi_ref: (T, D) rows [i*T, (i+1)*T)        of z  (first half,  z1 rows r)
    # zj_ref: (T, D) rows [B + i*T, B+(i+1)*T)  of z  (second half, z1 rows r+B)
    # out_ref: (1, 3) SMEM row: [sum log(1+pd_ii), sum qii, sum qij_interior]
    t = zi_ref.shape[0]
    zi = zi_ref[...].astype(jnp.float32)
    zj = zj_ref[...].astype(jnp.float32)

    # ---- attractive / qii, both directions (EPS breaks the symmetry) ----
    d_a = zi - zj + EPS                    # z1[r]   - z2[r]   = z[r]   - z[r+B]
    d_b = zj - zi + EPS                    # z1[r+B] - z2[r+B] = z[r+B] - z[r]
    pd_a = jnp.sum(d_a * d_a, axis=-1, keepdims=True)        # (T, 1)
    pd_b = jnp.sum(d_b * d_b, axis=-1, keepdims=True)        # (T, 1)
    att = jnp.sum(jnp.log(1.0 + pd_a)) + jnp.sum(jnp.log(1.0 + pd_b))
    # qii only feeds the s_inv statistic -> approximate reciprocal (EUP slot).
    qii = (jnp.sum(pl.reciprocal(1.0 + pd_a, approx=True))
           + jnp.sum(pl.reciprocal(1.0 + pd_b, approx=True)))

    # ---- repulsive term, tile-interior pairs (row k with row k+1 of the
    # other half). Computed from the already-upcast f32 values: no second ref
    # load and no duplicate upcast. The one boundary row per half (k = T-1) is
    # added by a tiny gather in the wrapper.
    d_ij_a = zi[: t - 1, :] - zj[1:, :] + EPS   # z1[r]   vs z2[r+1]   = z[B+r+1]
    d_ij_b = zj[: t - 1, :] - zi[1:, :] + EPS   # z1[B+r] vs z2[B+r+1] = z[r+1]
    pd_ij_a = jnp.sum(d_ij_a * d_ij_a, axis=-1, keepdims=True)
    pd_ij_b = jnp.sum(d_ij_b * d_ij_b, axis=-1, keepdims=True)
    qij = jnp.sum(1.0 / (1.0 + pd_ij_a)) + jnp.sum(1.0 / (1.0 + pd_ij_b))

    out_ref[0, 0] = att
    out_ref[0, 1] = qii
    out_ref[0, 2] = qij


def _min_row_tile(dtype):
    # Sub-32-bit dtypes pack rows along sublanes; keep whole packed groups.
    itemsize = jnp.dtype(dtype).itemsize
    if itemsize >= 4:
        return 8
    if itemsize == 2:
        return 16
    return 32


def _vmem_budget_bytes():
    # Working-set budget for one grid step; queried per generation when
    # possible, conservative fallback = 64 MiB (v7x per-core physical VMEM).
    try:
        cap = int(pltpu.get_tpu_info().vmem_capacity_bytes)
    except Exception:
        cap = 64 * 1024 * 1024
    return min(cap // 4, 16 * 1024 * 1024)


def _pick_row_tile(B, D, dtype, budget_bytes):
    # Largest divisor of B (multiple of the dtype's minimum sublane tile) whose
    # working set -- two input blocks x up-to-3 pipeline buffers in the native
    # dtype plus ~6 f32-sized temporaries (upcasts, diffs, shifted slices) --
    # fits the VMEM budget. No artificial 1024-row cap.
    itemsize = jnp.dtype(dtype).itemsize
    base = _min_row_tile(dtype)
    if B % base != 0:
        return None
    bytes_per_row = D * (6 * itemsize + 6 * 4)
    divisors = [d for d in range(base, B + 1, base) if B % d == 0]
    fitting = [d for d in divisors if d * bytes_per_row <= budget_bytes]
    return max(fitting) if fitting else base


def init_sce_state(N=60000.0, rho=-1.0, alpha=0.5, S_init=2.0):
    # Deterministic buffer init, exactly as SCEBase.__init__ (functional).
    return {
        "N": jnp.float32(N),
        "s_inv": jnp.float32(N ** S_init),
        "alpha": jnp.float32(alpha),
        "rho": jnp.float32(rho),
    }


def sce_loss_cauchy(z, idx, state, *, row_tile=None):
    """Forward of SCELoss('cauchy'). Returns (loss, new_state). `idx` unused."""
    del idx
    M, D = z.shape
    if M % 2 != 0:
        raise ValueError("SCELoss expects an even number of rows (2 * batch).")
    B = M // 2

    base = _min_row_tile(z.dtype)
    if row_tile is not None:
        if row_tile % base != 0 or B % row_tile != 0:
            raise ValueError(f"row_tile must divide B={B} and be a multiple of {base}")
        tile = row_tile
    else:
        tile = _pick_row_tile(B, D, z.dtype, _vmem_budget_bytes())
    if tile is None:
        # TODO(synk): un-tiled fallback for batch sizes that are not a multiple
        # of the minimum sublane tile (8 f32 / 16 bf16 / 32 int8 rows).
        raise NotImplementedError(
            f"batch size (z.shape[0] // 2) must be a multiple of {base} for {z.dtype}")

    nb_half = B // tile          # grid size: one step per (first, second)-half tile pair
    nb = M // tile               # total row tiles over z1 (for the boundary gather)

    # Deeper pipelining only pays off for small blocks with many grid steps.
    spec_kwargs = {}
    block_bytes = tile * D * jnp.dtype(z.dtype).itemsize
    if nb_half >= 8 and block_bytes <= 512 * 1024:
        spec_kwargs["pipeline_mode"] = pl.Buffered(3)

    in_specs = [
        # first-half tile:  rows [i*tile, (i+1)*tile)
        pl.BlockSpec((tile, D), lambda i: (i, 0), **spec_kwargs),
        # second-half tile: rows [B + i*tile, B + (i+1)*tile)
        pl.BlockSpec((tile, D), lambda i: (i + nb_half, 0), **spec_kwargs),
    ]
    # Per-tile partials -> no cross-step carry -> the grid axis is "parallel"
    # (uses both TensorCores on v7x; neutral on v5e/v6e).
    out_spec = pl.BlockSpec((1, 3), lambda i: (i, 0),
                            memory_space=pltpu.MemorySpace.SMEM)

    partials = pl.pallas_call(
        _cauchy_pair_kernel,
        out_shape=jax.ShapeDtypeStruct((nb_half, 3), jnp.float32),
        grid=(nb_half,),
        in_specs=in_specs,
        out_specs=out_spec,
        compiler_params=pltpu.CompilerParams(
            dimension_semantics=("parallel",),
            vmem_limit_bytes=32 * 1024 * 1024),
    )(z, z)  # z passed twice, but the two specs read disjoint blocks: one HBM pass total

    att_sum = jnp.sum(partials[:, 0])
    qii_sum = jnp.sum(partials[:, 1])
    qij_sum = jnp.sum(partials[:, 2])

    # ---- boundary repulsive pairs: last row of each tile in each half (nb
    # rows total). Kept as a tiny wrapper gather so the grid stays "parallel".
    tid = jnp.arange(nb, dtype=jnp.int32)
    rows = (tid + 1) * tile - 1                 # last row of each z1 tile
    partners = ((tid + 1) * tile + B) % M       # its roll(-1) partner in z2
    d_bd = z[rows].astype(jnp.float32) - z[partners].astype(jnp.float32) + EPS
    pd_bd = jnp.sum(d_bd * d_bd, axis=-1)
    qij_sum = qij_sum + jnp.sum(1.0 / (1.0 + pd_bd))

    N = state["N"]
    s_inv = state["s_inv"]
    alpha = state["alpha"]
    rho = state["rho"]

    z_hat = s_inv / (N * N)
    m = jnp.float32(M)
    loss = att_sum / m + qij_sum / (m * z_hat)

    # ----- update_s (scalar buffer bookkeeping, plain JAX, functional) -----
    Bii = m
    Bij = m
    xi = alpha * qii_sum + (1.0 - alpha) * qij_sum
    omega = alpha * Bii + (1.0 - alpha) * Bij
    momentum = jnp.where(rho < 0, N / (N + omega * 0.01), rho)
    weighted_sum_count = xi / omega
    new_s_inv = momentum * s_inv + (1.0 - momentum) * (N * N) * weighted_sum_count

    new_state = dict(state)
    new_state["s_inv"] = new_s_inv
    return loss, new_state


def _reference_loss(z, state):
    # Pure-JAX reference mirroring the PyTorch code.
    M = z.shape[0]
    B = M // 2
    zf = z.astype(jnp.float32)
    z1 = jnp.concatenate([zf[:B], zf[B:]], axis=0)
    z2 = jnp.concatenate([zf[B:], zf[:B]], axis=0)
    z2r = jnp.roll(z2, shift=-1, axis=0)
    pd_ii = jnp.sum((z1 - z2 + EPS) ** 2, axis=-1)
    qii = 1.0 / (1.0 + pd_ii)
    pd_ij = jnp.sum((z1 - z2r + EPS) ** 2, axis=-1)
    qij = 1.0 / (1.0 + pd_ij)
    zhat = state["s_inv"] / (state["N"] ** 2)
    return jnp.mean(-jnp.log(qii)) + jnp.mean(qij / zhat)


if __name__ == "__main__":
    key = jax.random.PRNGKey(0)
    B, D = 64, 128                             # small: 2B = 128 rows, 128 features
    z = jax.random.normal(key, (2 * B, D), dtype=jnp.float32)
    idx = jnp.arange(2 * B, dtype=jnp.int32)   # unused by the forward pass

    state = init_sce_state(N=60000.0, rho=-1.0, alpha=0.5, S_init=2.0)
    ref = _reference_loss(z, state)

    # Default tiling (one tile pair covers the whole batch).
    loss, new_state = jax.jit(sce_loss_cauchy)(z, idx, state)
    loss = jax.block_until_ready(loss)
    jax.block_until_ready(new_state["s_inv"])
    assert jnp.allclose(loss, ref, rtol=2e-5, atol=1e-5), (loss, ref)

    # Multi-step "parallel" grid path (4 tile pairs, per-tile SMEM partials,
    # wrapper boundary gather with 8 wrap-around pairs).
    loss2, _ = jax.jit(functools.partial(sce_loss_cauchy, row_tile=16))(z, idx, state)
    loss2 = jax.block_until_ready(loss2)
    assert jnp.allclose(loss2, ref, rtol=2e-5, atol=1e-5), (loss2, ref)

    print("KERNEL_OK")
</pallas_src>

<mosaic_0001>
module attributes {stable_mosaic.version = 11 : i64} {
  func.func @_cauchy_pair_kernel(%arg0: i32, %arg1: memref<64x128xf32, #tpu.memory_space<vmem>>, %arg2: memref<64x128xf32, #tpu.memory_space<vmem>>, %arg3: memref<1x3xf32, #tpu.memory_space<smem>>) attributes {dimension_semantics = [#tpu.dimension_semantics<parallel>], iteration_bounds = array<i64: 1>, scalar_prefetch = 0 : i64, scratch_operands = 0 : i64, tpu.core_type = #tpu.core_type<tc>, window_params = [{transform_indices = @transform_0, window_bounds = array<i64: 64, 128>}, {transform_indices = @transform_1, window_bounds = array<i64: 64, 128>}, {transform_indices = @transform_2, window_bounds = array<i64: 1, 3>}]} {
    %c0 = arith.constant 0 : index
    %c0_0 = arith.constant 0 : index
    %0 = vector.load %arg1[%c0, %c0_0] : memref<64x128xf32, #tpu.memory_space<vmem>>, vector<64x128xf32>
    %c0_1 = arith.constant 0 : index
    %c0_2 = arith.constant 0 : index
    %1 = vector.load %arg2[%c0_1, %c0_2] : memref<64x128xf32, #tpu.memory_space<vmem>>, vector<64x128xf32>
    %2 = arith.subf %0, %1 : vector<64x128xf32>
    %cst = arith.constant 9.99999997E-7 : f32
    %3 = vector.broadcast %cst : f32 to vector<64x128xf32>
    %4 = arith.addf %2, %3 : vector<64x128xf32>
    %5 = arith.subf %1, %0 : vector<64x128xf32>
    %cst_3 = arith.constant 9.99999997E-7 : f32
    %6 = vector.broadcast %cst_3 : f32 to vector<64x128xf32>
    %7 = arith.addf %5, %6 : vector<64x128xf32>
    %8 = arith.mulf %4, %4 : vector<64x128xf32>
    %cst_4 = arith.constant dense<0.000000e+00> : vector<64xf32>
    %9 = vector.multi_reduction <add>, %8, %cst_4 [1] : vector<64x128xf32> to vector<64xf32>
    %10 = vector.shape_cast %9 : vector<64xf32> to vector<64x1xf32>
    %11 = arith.mulf %7, %7 : vector<64x128xf32>
    %cst_5 = arith.constant dense<0.000000e+00> : vector<64xf32>
    %12 = vector.multi_reduction <add>, %11, %cst_5 [1] : vector<64x128xf32> to vector<64xf32>
    %13 = vector.shape_cast %12 : vector<64xf32> to vector<64x1xf32>
    %cst_6 = arith.constant 1.000000e+00 : f32
    %14 = vector.broadcast %cst_6 : f32 to vector<64x1xf32>
    %15 = arith.addf %14, %10 : vector<64x1xf32>
    %16 = math.log %15 : vector<64x1xf32>
    %17 = vector.shape_cast %16 : vector<64x1xf32> to vector<1x64x1xf32>
    %cst_7 = arith.constant dense<0.000000e+00> : vector<1xf32>
    %18 = vector.multi_reduction <add>, %17, %cst_7 [1, 2] : vector<1x64x1xf32> to vector<1xf32>
    %19 = vector.shape_cast %18 : vector<1xf32> to vector<1x1x1xf32>
    %20 = vector.extract %19[0, 0, 0] : f32 from vector<1x1x1xf32>
    %cst_8 = arith.constant 1.000000e+00 : f32
    %21 = vector.broadcast %cst_8 : f32 to vector<64x1xf32>
    %22 = arith.addf %21, %13 : vector<64x1xf32>
    %23 = math.log %22 : vector<64x1xf32>
    %24 = vector.shape_cast %23 : vector<64x1xf32> to vector<1x64x1xf32>
    %cst_9 = arith.constant dense<0.000000e+00> : vector<1xf32>
    %25 = vector.multi_reduction <add>, %24, %cst_9 [1, 2] : vector<1x64x1xf32> to vector<1xf32>
    %26 = vector.shape_cast %25 : vector<1xf32> to vector<1x1x1xf32>
    %27 = vector.extract %26[0, 0, 0] : f32 from vector<1x1x1xf32>
    %28 = arith.addf %20, %27 : f32
    %cst_10 = arith.constant 1.000000e+00 : f32
    %29 = vector.broadcast %cst_10 : f32 to vector<64x1xf32>
    %30 = arith.addf %29, %10 : vector<64x1xf32>
    %31 = tpu.reciprocal %30 {approx = true} : vector<64x1xf32> -> vector<64x1xf32>
    %32 = vector.shape_cast %31 : vector<64x1xf32> to vector<1x64x1xf32>
    %cst_11 = arith.constant dense<0.000000e+00> : vector<1xf32>
    %33 = vector.multi_reduction <add>, %32, %cst_11 [1, 2] : vector<1x64x1xf32> to vector<1xf32>
    %34 = vector.shape_cast %33 : vector<1xf32> to vector<1x1x1xf32>
    %35 = vector.extract %34[0, 0, 0] : f32 from vector<1x1x1xf32>
    %cst_12 = arith.constant 1.000000e+00 : f32
    %36 = vector.broadcast %cst_12 : f32 to vector<64x1xf32>
    %37 = arith.addf %36, %13 : vector<64x1xf32>
    %38 = tpu.reciprocal %37 {approx = true} : vector<64x1xf32> -> vector<64x1xf32>
    %39 = vector.shape_cast %38 : vector<64x1xf32> to vector<1x64x1xf32>
    %cst_13 = arith.constant dense<0.000000e+00> : vector<1xf32>
    %40 = vector.multi_reduction <add>, %39, %cst_13 [1, 2] : vector<1x64x1xf32> to vector<1xf32>
    %41 = vector.shape_cast %40 : vector<1xf32> to vector<1x1x1xf32>
    %42 = vector.extract %41[0, 0, 0] : f32 from vector<1x1x1xf32>
    %43 = arith.addf %35, %42 : f32
    %44 = vector.extract_strided_slice %0 {offsets = [0, 0], sizes = [63, 128], strides = [1, 1]} : vector<64x128xf32> to vector<63x128xf32>
    %45 = vector.extract_strided_slice %1 {offsets = [1, 0], sizes = [63, 128], strides = [1, 1]} : vector<64x128xf32> to vector<63x128xf32>
    %46 = arith.subf %44, %45 : vector<63x128xf32>
    %cst_14 = arith.constant 9.99999997E-7 : f32
    %47 = vector.broadcast %cst_14 : f32 to vector<63x128xf32>
    %48 = arith.addf %46, %47 : vector<63x128xf32>
    %49 = vector.extract_strided_slice %1 {offsets = [0, 0], sizes = [63, 128], strides = [1, 1]} : vector<64x128xf32> to vector<63x128xf32>
    %50 = vector.extract_strided_slice %0 {offsets = [1, 0], sizes = [63, 128], strides = [1, 1]} : vector<64x128xf32> to vector<63x128xf32>
    %51 = arith.subf %49, %50 : vector<63x128xf32>
    %cst_15 = arith.constant 9.99999997E-7 : f32
    %52 = vector.broadcast %cst_15 : f32 to vector<63x128xf32>
    %53 = arith.addf %51, %52 : vector<63x128xf32>
    %54 = arith.mulf %48, %48 : vector<63x128xf32>
    %cst_16 = arith.constant dense<0.000000e+00> : vector<63xf32>
    %55 = vector.multi_reduction <add>, %54, %cst_16 [1] : vector<63x128xf32> to vector<63xf32>
    %56 = vector.shape_cast %55 : vector<63xf32> to vector<63x1xf32>
    %57 = arith.mulf %53, %53 : vector<63x128xf32>
    %cst_17 = arith.constant dense<0.000000e+00> : vector<63xf32>
    %58 = vector.multi_reduction <add>, %57, %cst_17 [1] : vector<63x128xf32> to vector<63xf32>
    %59 = vector.shape_cast %58 : vector<63xf32> to vector<63x1xf32>
    %cst_18 = arith.constant 1.000000e+00 : f32
    %60 = vector.broadcast %cst_18 : f32 to vector<63x1xf32>
    %61 = arith.addf %60, %56 : vector<63x1xf32>
    %cst_19 = arith.constant 1.000000e+00 : f32
    %62 = vector.broadcast %cst_19 : f32 to vector<63x1xf32>
    %63 = arith.divf %62, %61 : vector<63x1xf32>
    %64 = vector.shape_cast %63 : vector<63x1xf32> to vector<1x63x1xf32>
    %cst_20 = arith.constant dense<0.000000e+00> : vector<1xf32>
    %65 = vector.multi_reduction <add>, %64, %cst_20 [1, 2] : vector<1x63x1xf32> to vector<1xf32>
    %66 = vector.shape_cast %65 : vector<1xf32> to vector<1x1x1xf32>
    %67 = vector.extract %66[0, 0, 0] : f32 from vector<1x1x1xf32>
    %cst_21 = arith.constant 1.000000e+00 : f32
    %68 = vector.broadcast %cst_21 : f32 to vector<63x1xf32>
    %69 = arith.addf %68, %59 : vector<63x1xf32>
    %cst_22 = arith.constant 1.000000e+00 : f32
    %70 = vector.broadcast %cst_22 : f32 to vector<63x1xf32>
    %71 = arith.divf %70, %69 : vector<63x1xf32>
    %72 = vector.shape_cast %71 : vector<63x1xf32> to vector<1x63x1xf32>
    %cst_23 = arith.constant dense<0.000000e+00> : vector<1xf32>
    %73 = vector.multi_reduction <add>, %72, %cst_23 [1, 2] : vector<1x63x1xf32> to vector<1xf32>
    %74 = vector.shape_cast %73 : vector<1xf32> to vector<1x1x1xf32>
    %75 = vector.extract %74[0, 0, 0] : f32 from vector<1x1x1xf32>
    %76 = arith.addf %67, %75 : f32
    %c0_24 = arith.constant 0 : index
    %c0_25 = arith.constant 0 : index
    %77 = memref.load %arg3[%c0_24, %c0_25] : memref<1x3xf32, #tpu.memory_space<smem>>
    memref.store %28, %arg3[%c0_24, %c0_25] : memref<1x3xf32, #tpu.memory_space<smem>>
    %c0_26 = arith.constant 0 : index
    %c1 = arith.constant 1 : index
    %78 = memref.load %arg3[%c0_26, %c1] : memref<1x3xf32, #tpu.memory_space<smem>>
    memref.store %43, %arg3[%c0_26, %c1] : memref<1x3xf32, #tpu.memory_space<smem>>
    %c0_27 = arith.constant 0 : index
    %c2 = arith.constant 2 : index
    %79 = memref.load %arg3[%c0_27, %c2] : memref<1x3xf32, #tpu.memory_space<smem>>
    memref.store %76, %arg3[%c0_27, %c2] : memref<1x3xf32, #tpu.memory_space<smem>>
    return
  }
  func.func @transform_0(%arg0: i32) -> (i32, i32) {
    %c0_i32 = arith.constant 0 : i32
    %c0_i32_0 = arith.constant 0 : i32
    return %arg0, %c0_i32 : i32, i32
  }
  func.func @transform_1(%arg0: i32) -> (i32, i32) {
    %c1_i32 = arith.constant 1 : i32
    %0 = arith.addi %arg0, %c1_i32 : i32
    %c0_i32 = arith.constant 0 : i32
    %c0_i32_0 = arith.constant 0 : i32
    return %0, %c0_i32 : i32, i32
  }
  func.func @transform_2(%arg0: i32) -> (i32, i32) {
    %c0_i32 = arith.constant 0 : i32
    %c0_i32_0 = arith.constant 0 : i32
    return %arg0, %c0_i32 : i32, i32
  }
}

</mosaic_0001>

<llo_original>
// kernel: sce_loss_cauchy.1
$region0: #{sce_loss_cauchy.1}
  #allocation0 [shape = 'u32[]', space=smem, size = 0x4, offset = 0x4, fixed_abs, tag = 'smem constant byte address 0x4 - core index']
  #allocation1 [shape = 'u32[72,128]{1,0:T(1,128)}', space=vmem, size = 0x9000, scoped, tag = 'internal scratch']
  %s0 = inlined_call_operand.hbm [shape: f32[128,128], index: 0, kind: input, shape index: {}, may-alias: {0,1}]
  %s1 = inlined_call_operand.hbm [shape: f32[128,128], index: 1, kind: input, shape index: {}, may-alias: {0,1}]
  %s2 = inlined_call_operand.vmem [shape: f32[1,3], index: 2, kind: output, shape index: {}]
  %s3 = sld [smem:[#allocation0]]
  $region26: #{sce_loss_cauchy.1} parent=0
    _
  %s5 = ssub.s32 1, %s3
  %s6 = scalar_select 0, %s5, %s3
  $region1: #{sce_loss_cauchy.1} parent=0
    #allocation2 [shape = 'u8[32768]{0}', space=vmem, size = 0x8000, scoped, tag = 'input window, operand 0, single buffered']
    #allocation3 [shape = 's32[1]{0}', space=sflag, size = 0x4, scoped, tag = 'scoped memory for sce_loss_cauchy.1']
    #allocation4 [shape = 's32[1]{0}', space=sflag, size = 0x4, scoped, tag = 'scoped memory for sce_loss_cauchy.1']
    #allocation5 [shape = 'u8[32768]{0}', space=vmem, size = 0x8000, scoped, tag = 'input window, operand 1, single buffered']
    #allocation6 [shape = 's32[1]{0}', space=sflag, size = 0x4, scoped, tag = 'scoped memory for sce_loss_cauchy.1']
    #allocation7 [shape = 'u8[512]{0}', space=smem, size = 0x200, scoped, tag = 'output window, operand 0, single buffered']
    %7 = vsyncpa [#allocation3], 0
    %8 = vsyncpa [#allocation6], 0
    %9 = vsyncpa [#allocation4], 0
    // Predicated region
    $region2: #{sce_loss_cauchy.1} parent=1 // pred_check
      _
    $region3: #{sce_loss_cauchy.1} parent=1 // pred_check_branch
      %11 = sbr.rel (0) target = $region5
    $region4: #{sce_loss_cauchy.1} parent=1 // pred_region
      %13 = vsyncadd [#allocation3], 0
      %s14 = sshll.u32 %s0, 4
      %s15 = int_to_ptr.hbm [resolvable:$true] %s14
      %s16 = sshll.u32 [#allocation2], 4
      %s17 = int_to_ptr.vmem [resolvable:$true] %s16
      %22 = dma.hbm_to_vmem [thread:$0]  %s15, 1024, %s17, [#allocation3], 128, 128, 8
    $region5: #{sce_loss_cauchy.1} parent=1 // pred_fallthru
      _
    // Predicated region
    $region6: #{sce_loss_cauchy.1} parent=1 // pred_check
      _
    $region7: #{sce_loss_cauchy.1} parent=1 // pred_check_branch
      %24 = sbr.rel (0) target = $region9
    $region8: #{sce_loss_cauchy.1} parent=1 // pred_region
      %s25 = sadd.s32 0, 1
      %s26 = smul.u32 8, %s25
      %28 = vsyncadd [#allocation6], 0
      %s29 = smul.addr %s26, 8
      %s30 = scalar_lea.hbm %s1, %s29
      %s31 = sshll.u32 %s30, 4
      %s32 = int_to_ptr.hbm [resolvable:$true] %s31
      %s33 = sshll.u32 [#allocation5], 4
      %s34 = int_to_ptr.vmem [resolvable:$true] %s33
      %39 = dma.hbm_to_vmem [thread:$0]  %s32, 1024, %s34, [#allocation6], 128, 128, 8
    $region9: #{sce_loss_cauchy.1} parent=1 // pred_fallthru
      _
    // Predicated region
    $region10: #{sce_loss_cauchy.1} parent=1 // pred_check
      _
    $region11: #{sce_loss_cauchy.1} parent=1 // pred_check_branch
      %41 = sbr.rel (0) target = $region13
    $region12: #{sce_loss_cauchy.1} parent=1 // pred_region
      %43 = dma.done [#allocation3], 1024
    $region13: #{sce_loss_cauchy.1} parent=1 // pred_fallthru
      _
    // Predicated region
    $region14: #{sce_loss_cauchy.1} parent=1 // pred_check
      _
    $region15: #{sce_loss_cauchy.1} parent=1 // pred_check_branch
      %45 = sbr.rel (0) target = $region17
    $region16: #{sce_loss_cauchy.1} parent=1 // pred_region
      %47 = dma.done [#allocation6], 1024
    $region17: #{sce_loss_cauchy.1} parent=1 // pred_fallthru
      _
    %s48 = sadd.s32 0, 1
    %s49 = smul.u32 8, %s48
    %v50 = vld [vmem:[#allocation2] sm:$0xff]
    %v51 = vld [vmem:[#allocation2 + $0x8] sm:$0xff]
    %v52 = vld [vmem:[#allocation2 + $0x10] sm:$0xff]
    %v53 = vld [vmem:[#allocation2 + $0x18] sm:$0xff]
    %v54 = vld [vmem:[#allocation2 + $0x20] sm:$0xff]
    %v55 = vld [vmem:[#allocation2 + $0x28] sm:$0xff]
    %v56 = vld [vmem:[#allocation2 + $0x30] sm:$0xff]
    %v57 = vld [vmem:[#allocation2 + $0x38] sm:$0xff]
    %v58 = vld [vmem:[#allocation5] sm:$0xff]
    %v59 = vld [vmem:[#allocation5 + $0x8] sm:$0xff]
    %v60 = vld [vmem:[#allocation5 + $0x10] sm:$0xff]
    %v61 = vld [vmem:[#allocation5 + $0x18] sm:$0xff]
    %v62 = vld [vmem:[#allocation5 + $0x20] sm:$0xff]
    %v63 = vld [vmem:[#allocation5 + $0x28] sm:$0xff]
    %v64 = vld [vmem:[#allocation5 + $0x30] sm:$0xff]
    %v65 = vld [vmem:[#allocation5 + $0x38] sm:$0xff]
    %v66 = vsub.f32 %v50, %v58
    %v67 = vsub.f32 %v51, %v59
    %v68 = vsub.f32 %v52, %v60
    %v69 = vsub.f32 %v53, %v61
    %v70 = vsub.f32 %v54, %v62
    %v71 = vsub.f32 %v55, %v63
    %v72 = vsub.f32 %v56, %v64
    %v73 = vsub.f32 %v57, %v65
    %v74 = vadd.f32 %v66, 1e-06
    %v75 = vadd.f32 %v67, 1e-06
    %v76 = vadd.f32 %v68, 1e-06
    %v77 = vadd.f32 %v69, 1e-06
    %v78 = vadd.f32 %v70, 1e-06
    %v79 = vadd.f32 %v71, 1e-06
    %v80 = vadd.f32 %v72, 1e-06
    %v81 = vadd.f32 %v73, 1e-06
    %v82 = vsub.f32 %v58, %v50
    %v83 = vsub.f32 %v59, %v51
    %v84 = vsub.f32 %v60, %v52
    %v85 = vsub.f32 %v61, %v53
    %v86 = vsub.f32 %v62, %v54
    %v87 = vsub.f32 %v63, %v55
    %v88 = vsub.f32 %v64, %v56
    %v89 = vsub.f32 %v65, %v57
    %v90 = vadd.f32 %v82, 1e-06
    %v91 = vadd.f32 %v83, 1e-06
    %v92 = vadd.f32 %v84, 1e-06
    %v93 = vadd.f32 %v85, 1e-06
    %v94 = vadd.f32 %v86, 1e-06
    %v95 = vadd.f32 %v87, 1e-06
    %v96 = vadd.f32 %v88, 1e-06
    %v97 = vadd.f32 %v89, 1e-06
    %v98 = vmul.f32 %v74, %v74
    %v99 = vmul.f32 %v75, %v75
    %v100 = vmul.f32 %v76, %v76
    %v101 = vmul.f32 %v77, %v77
    %v102 = vmul.f32 %v78, %v78
    %v103 = vmul.f32 %v79, %v79
    %v104 = vmul.f32 %v80, %v80
    %v105 = vmul.f32 %v81, %v81
    %106 = vadd.xlane.f32.xlu0 %v98
    %v107 = vpop.xlane.xlu0 %106
    %108 = vadd.xlane.f32.xlu0 %v99
    %v109 = vpop.xlane.xlu0 %108
    %110 = vadd.xlane.f32.xlu0 %v100
    %v111 = vpop.xlane.xlu0 %110
    %112 = vadd.xlane.f32.xlu0 %v101
    %v113 = vpop.xlane.xlu0 %112
    %114 = vadd.xlane.f32.xlu0 %v102
    %v115 = vpop.xlane.xlu0 %114
    %116 = vadd.xlane.f32.xlu0 %v103
    %v117 = vpop.xlane.xlu0 %116
    %118 = vadd.xlane.f32.xlu0 %v104
    %v119 = vpop.xlane.xlu0 %118
    %120 = vadd.xlane.f32.xlu0 %v105
    %v121 = vpop.xlane.xlu0 %120
    %v122 = vmul.f32 %v90, %v90
    %v123 = vmul.f32 %v91, %v91
    %v124 = vmul.f32 %v92, %v92
    %v125 = vmul.f32 %v93, %v93
    %v126 = vmul.f32 %v94, %v94
    %v127 = vmul.f32 %v95, %v95
    %v128 = vmul.f32 %v96, %v96
    %v129 = vmul.f32 %v97, %v97
    %130 = vadd.xlane.f32.xlu0 %v122
    %v131 = vpop.xlane.xlu0 %130
    %132 = vadd.xlane.f32.xlu0 %v123
    %v133 = vpop.xlane.xlu0 %132
    %134 = vadd.xlane.f32.xlu0 %v124
    %v135 = vpop.xlane.xlu0 %134
    %136 = vadd.xlane.f32.xlu0 %v125
    %v137 = vpop.xlane.xlu0 %136
    %138 = vadd.xlane.f32.xlu0 %v126
    %v139 = vpop.xlane.xlu0 %138
    %140 = vadd.xlane.f32.xlu0 %v127
    %v141 = vpop.xlane.xlu0 %140
    %142 = vadd.xlane.f32.xlu0 %v128
    %v143 = vpop.xlane.xlu0 %142
    %144 = vadd.xlane.f32.xlu0 %v129
    %v145 = vpop.xlane.xlu0 %144
    %v146 = vadd.f32 %v107, 1.0
    %v147 = vadd.f32 %v109, 1.0
    %v148 = vadd.f32 %v111, 1.0
    %v149 = vadd.f32 %v113, 1.0
    %v150 = vadd.f32 %v115, 1.0
    %v151 = vadd.f32 %v117, 1.0
    %v152 = vadd.f32 %v119, 1.0
    %v153 = vadd.f32 %v121, 1.0
    %v154 = vlog2.pop %v146
    %v155 = vmul.f32 %v154, 0.6931472
    %v156 = vlog2.pop %v147
    %v157 = vmul.f32 %v156, 0.6931472
    %v158 = vlog2.pop %v148
    %v159 = vmul.f32 %v158, 0.6931472
    %v160 = vlog2.pop %v149
    %v161 = vmul.f32 %v160, 0.6931472
    %v162 = vlog2.pop %v150
    %v163 = vmul.f32 %v162, 0.6931472
    %v164 = vlog2.pop %v151
    %v165 = vmul.f32 %v164, 0.6931472
    %v166 = vlog2.pop %v152
    %v167 = vmul.f32 %v166, 0.6931472
    %v168 = vlog2.pop %v153
    %v169 = vmul.f32 %v168, 0.6931472
    %vm170 = vcmask 7168
    %v171 = vsel %vm170, %v155, 0.0
    %v172 = vsel %vm170, %v157, 0.0
    %v173 = vadd.f32 %v171, %v172
    %v174 = vsel %vm170, %v159, 0.0
    %v175 = vadd.f32 %v173, %v174
    %v176 = vsel %vm170, %v161, 0.0
    %v177 = vadd.f32 %v175, %v176
    %v178 = vsel %vm170, %v163, 0.0
    %v179 = vadd.f32 %v177, %v178
    %v180 = vsel %vm170, %v165, 0.0
    %v181 = vadd.f32 %v179, %v180
    %v182 = vsel %vm170, %v167, 0.0
    %v183 = vadd.f32 %v181, %v182
    %v184 = vsel %vm170, %v169, 0.0
    %v185 = vadd.f32 %v183, %v184
    %186 = vadd.xlane.f32.xlu0 %v185
    %v187 = vpop.xlane.xlu0 %186
    %v188 = vrot.slane %v187, 4
    %v189 = vadd.f32 %v187, %v188
    %v190 = vrot.slane %v189, 2
    %v191 = vadd.f32 %v189, %v190
    %v192 = vrot.slane %v191, 1
    %v193 = vadd.f32 %v191, %v192
    %s194 = vtos %v193
    %v195 = vadd.f32 %v131, 1.0
    %v196 = vadd.f32 %v133, 1.0
    %v197 = vadd.f32 %v135, 1.0
    %v198 = vadd.f32 %v137, 1.0
    %v199 = vadd.f32 %v139, 1.0
    %v200 = vadd.f32 %v141, 1.0
    %v201 = vadd.f32 %v143, 1.0
    %v202 = vadd.f32 %v145, 1.0
    %v203 = vlog2.pop %v195
    %v204 = vmul.f32 %v203, 0.6931472
    %v205 = vlog2.pop %v196
    %v206 = vmul.f32 %v205, 0.6931472
    %v207 = vlog2.pop %v197
    %v208 = vmul.f32 %v207, 0.6931472
    %v209 = vlog2.pop %v198
    %v210 = vmul.f32 %v209, 0.6931472
    %v211 = vlog2.pop %v199
    %v212 = vmul.f32 %v211, 0.6931472
    %v213 = vlog2.pop %v200
    %v214 = vmul.f32 %v213, 0.6931472
    %v215 = vlog2.pop %v201
    %v216 = vmul.f32 %v215, 0.6931472
    %v217 = vlog2.pop %v202
    %v218 = vmul.f32 %v217, 0.6931472
    %v219 = vsel %vm170, %v204, 0.0
    %v220 = vsel %vm170, %v206, 0.0
    %v221 = vadd.f32 %v219, %v220
    %v222 = vsel %vm170, %v208, 0.0
    %v223 = vadd.f32 %v221, %v222
    %v224 = vsel %vm170, %v210, 0.0
    %v225 = vadd.f32 %v223, %v224
    %v226 = vsel %vm170, %v212, 0.0
    %v227 = vadd.f32 %v225, %v226
    %v228 = vsel %vm170, %v214, 0.0
    %v229 = vadd.f32 %v227, %v228
    %v230 = vsel %vm170, %v216, 0.0
    %v231 = vadd.f32 %v229, %v230
    %v232 = vsel %vm170, %v218, 0.0
    %v233 = vadd.f32 %v231, %v232
    %234 = vadd.xlane.f32.xlu0 %v233
    %v235 = vpop.xlane.xlu0 %234
    %v236 = vrot.slane %v235, 4
    %v237 = vadd.f32 %v235, %v236
    %v238 = vrot.slane %v237, 2
    %v239 = vadd.f32 %v237, %v238
    %v240 = vrot.slane %v239, 1
    %v241 = vadd.f32 %v239, %v240
    %s242 = vtos %v241
    %s243 = sadd.f32 %s194, %s242
    %v244 = vrcp.pop %v146
    %v245 = vrcp.pop %v147
    %v246 = vrcp.pop %v148
    %v247 = vrcp.pop %v149
    %v248 = vrcp.pop %v150
    %v249 = vrcp.pop %v151
    %v250 = vrcp.pop %v152
    %v251 = vrcp.pop %v153
    %v252 = vsel %vm170, %v244, 0.0
    %v253 = vsel %vm170, %v245, 0.0
    %v254 = vadd.f32 %v252, %v253
    %v255 = vsel %vm170, %v246, 0.0
    %v256 = vadd.f32 %v254, %v255
    %v257 = vsel %vm170, %v247, 0.0
    %v258 = vadd.f32 %v256, %v257
    %v259 = vsel %vm170, %v248, 0.0
    %v260 = vadd.f32 %v258, %v259
    %v261 = vsel %vm170, %v249, 0.0
    %v262 = vadd.f32 %v260, %v261
    %v263 = vsel %vm170, %v250, 0.0
    %v264 = vadd.f32 %v262, %v263
    %v265 = vsel %vm170, %v251, 0.0
    %v266 = vadd.f32 %v264, %v265
    %267 = vadd.xlane.f32.xlu0 %v266
    %v268 = vpop.xlane.xlu0 %267
    %v269 = vrot.slane %v268, 4
    %v270 = vadd.f32 %v268, %v269
    %v271 = vrot.slane %v270, 2
    %v272 = vadd.f32 %v270, %v271
    %v273 = vrot.slane %v272, 1
    %v274 = vadd.f32 %v272, %v273
    %s275 = vtos %v274
    %v276 = vrcp.pop %v195
    %v277 = vrcp.pop %v196
    %v278 = vrcp.pop %v197
    %v279 = vrcp.pop %v198
    %v280 = vrcp.pop %v199
    %v281 = vrcp.pop %v200
    %v282 = vrcp.pop %v201
    %v283 = vrcp.pop %v202
    %v284 = vsel %vm170, %v276, 0.0
    %v285 = vsel %vm170, %v277, 0.0
    %v286 = vadd.f32 %v284, %v285
    %v287 = vsel %vm170, %v278, 0.0
    %v288 = vadd.f32 %v286, %v287
    %v289 = vsel %vm170, %v279, 0.0
    %v290 = vadd.f32 %v288, %v289
    %v291 = vsel %vm170, %v280, 0.0
    %v292 = vadd.f32 %v290, %v291
    %v293 = vsel %vm170, %v281, 0.0
    %v294 = vadd.f32 %v292, %v293
    %v295 = vsel %vm170, %v282, 0.0
    %v296 = vadd.f32 %v294, %v295
    %v297 = vsel %vm170, %v283, 0.0
    %v298 = vadd.f32 %v296, %v297
    %299 = vadd.xlane.f32.xlu0 %v298
    %v300 = vpop.xlane.xlu0 %299
    %v301 = vrot.slane %v300, 4
    %v302 = vadd.f32 %v300, %v301
    %v303 = vrot.slane %v302, 2
    %v304 = vadd.f32 %v302, %v303
    %v305 = vrot.slane %v304, 1
    %v306 = vadd.f32 %v304, %v305
    %s307 = vtos %v306
    %s308 = sadd.f32 %s275, %s307
    %vm317 = vcmask 1046528
    %v318 = vrot.slane %v58, 1
    %v319 = vrot.slane %v59, 1
    %v320 = vsel %vm317, %v318, %v319
    %v321 = vrot.slane %v60, 1
    %v322 = vsel %vm317, %v319, %v321
    %v323 = vrot.slane %v61, 1
    %v324 = vsel %vm317, %v321, %v323
    %v325 = vrot.slane %v62, 1
    %v326 = vsel %vm317, %v323, %v325
    %v327 = vrot.slane %v63, 1
    %v328 = vsel %vm317, %v325, %v327
    %v329 = vrot.slane %v64, 1
    %v330 = vsel %vm317, %v327, %v329
    %v331 = vrot.slane %v65, 1
    %v332 = vsel %vm317, %v329, %v331
    %v341 = vsub.f32 %v50, %v320
    %v342 = vsub.f32 %v51, %v322
    %v343 = vsub.f32 %v52, %v324
    %v344 = vsub.f32 %v53, %v326
    %v345 = vsub.f32 %v54, %v328
    %v346 = vsub.f32 %v55, %v330
    %v347 = vsub.f32 %v56, %v332
    %v348 = vsub.f32 %v57, %v331
    %v349 = vadd.f32 %v341, 1e-06
    %v350 = vadd.f32 %v342, 1e-06
    %v351 = vadd.f32 %v343, 1e-06
    %v352 = vadd.f32 %v344, 1e-06
    %v353 = vadd.f32 %v345, 1e-06
    %v354 = vadd.f32 %v346, 1e-06
    %v355 = vadd.f32 %v347, 1e-06
    %v356 = vadd.f32 %v348, 1e-06
    %v365 = vrot.slane %v50, 1
    %v366 = vrot.slane %v51, 1
    %v367 = vsel %vm317, %v365, %v366
    %v368 = vrot.slane %v52, 1
    %v369 = vsel %vm317, %v366, %v368
    %v370 = vrot.slane %v53, 1
    %v371 = vsel %vm317, %v368, %v370
    %v372 = vrot.slane %v54, 1
    %v373 = vsel %vm317, %v370, %v372
    %v374 = vrot.slane %v55, 1
    %v375 = vsel %vm317, %v372, %v374
    %v376 = vrot.slane %v56, 1
    %v377 = vsel %vm317, %v374, %v376
    %v378 = vrot.slane %v57, 1
    %v379 = vsel %vm317, %v376, %v378
    %v388 = vsub.f32 %v58, %v367
    %v389 = vsub.f32 %v59, %v369
    %v390 = vsub.f32 %v60, %v371
    %v391 = vsub.f32 %v61, %v373
    %v392 = vsub.f32 %v62, %v375
    %v393 = vsub.f32 %v63, %v377
    %v394 = vsub.f32 %v64, %v379
    %v395 = vsub.f32 %v65, %v378
    %v396 = vadd.f32 %v388, 1e-06
    %v397 = vadd.f32 %v389, 1e-06
    %v398 = vadd.f32 %v390, 1e-06
    %v399 = vadd.f32 %v391, 1e-06
    %v400 = vadd.f32 %v392, 1e-06
    %v401 = vadd.f32 %v393, 1e-06
    %v402 = vadd.f32 %v394, 1e-06
    %v403 = vadd.f32 %v395, 1e-06
    %v404 = vmul.f32 %v349, %v349
    %v405 = vmul.f32 %v350, %v350
    %v406 = vmul.f32 %v351, %v351
    %v407 = vmul.f32 %v352, %v352
    %v408 = vmul.f32 %v353, %v353
    %v409 = vmul.f32 %v354, %v354
    %v410 = vmul.f32 %v355, %v355
    %v411 = vmul.f32 %v356, %v356
    %412 = vadd.xlane.f32.xlu0 %v404
    %v413 = vpop.xlane.xlu0 %412
    %414 = vadd.xlane.f32.xlu0 %v405
    %v415 = vpop.xlane.xlu0 %414
    %416 = vadd.xlane.f32.xlu0 %v406
    %v417 = vpop.xlane.xlu0 %416
    %418 = vadd.xlane.f32.xlu0 %v407
    %v419 = vpop.xlane.xlu0 %418
    %420 = vadd.xlane.f32.xlu0 %v408
    %v421 = vpop.xlane.xlu0 %420
    %422 = vadd.xlane.f32.xlu0 %v409
    %v423 = vpop.xlane.xlu0 %422
    %424 = vadd.xlane.f32.xlu0 %v410
    %v425 = vpop.xlane.xlu0 %424
    %v426 = vsel %vm317, %v411, 0.0
    %427 = vadd.xlane.f32.xlu0 %v426
    %v428 = vpop.xlane.xlu0 %427
    %v429 = vmul.f32 %v396, %v396
    %v430 = vmul.f32 %v397, %v397
    %v431 = vmul.f32 %v398, %v398
    %v432 = vmul.f32 %v399, %v399
    %v433 = vmul.f32 %v400, %v400
    %v434 = vmul.f32 %v401, %v401
    %v435 = vmul.f32 %v402, %v402
    %v436 = vmul.f32 %v403, %v403
    %437 = vadd.xlane.f32.xlu0 %v429
    %v438 = vpop.xlane.xlu0 %437
    %439 = vadd.xlane.f32.xlu0 %v430
    %v440 = vpop.xlane.xlu0 %439
    %441 = vadd.xlane.f32.xlu0 %v431
    %v442 = vpop.xlane.xlu0 %441
    %443 = vadd.xlane.f32.xlu0 %v432
    %v444 = vpop.xlane.xlu0 %443
    %445 = vadd.xlane.f32.xlu0 %v433
    %v446 = vpop.xlane.xlu0 %445
    %447 = vadd.xlane.f32.xlu0 %v434
    %v448 = vpop.xlane.xlu0 %447
    %449 = vadd.xlane.f32.xlu0 %v435
    %v450 = vpop.xlane.xlu0 %449
    %v451 = vsel %vm317, %v436, 0.0
    %452 = vadd.xlane.f32.xlu0 %v451
    %v453 = vpop.xlane.xlu0 %452
    %v454 = vadd.f32 %v413, 1.0
    %v455 = vadd.f32 %v415, 1.0
    %v456 = vadd.f32 %v417, 1.0
    %v457 = vadd.f32 %v419, 1.0
    %v458 = vadd.f32 %v421, 1.0
    %v459 = vadd.f32 %v423, 1.0
    %v460 = vadd.f32 %v425, 1.0
    %v461 = vadd.f32 %v428, 1.0
    %v462 = vrcp.pop %v454
    %v463 = vmul.f32 %v454, %v462
    %v464 = vsub.f32 1.0, %v463
    %v465 = vmul.f32 %v462, %v464
    %v466 = vadd.f32 %v462, %v465
    %vm467 = vweird.f32 %v454
    %vm468 = vweird.f32 %v462
    %vm469 = vmor %vm467, %vm468
    %v470 = vsel %vm469, %v462, %v466
    %v471 = vand.u32 2147483647, %v454
    %vm472 = vcmp.eq.f32.partialorder %v471, 8.507059e+37
    %v473 = vand.u32 %v454, 2147483648
    %v474 = vor.u32 1.1754944e-38, %v473
    %v475 = vsel %vm472, %v474, %v470
    %v476 = vmul.f32 1.0, %v475
    %v477 = vrcp.pop %v455
    %v478 = vmul.f32 %v455, %v477
    %v479 = vsub.f32 1.0, %v478
    %v480 = vmul.f32 %v477, %v479
    %v481 = vadd.f32 %v477, %v480
    %vm482 = vweird.f32 %v455
    %vm483 = vweird.f32 %v477
    %vm484 = vmor %vm482, %vm483
    %v485 = vsel %vm484, %v477, %v481
    %v486 = vand.u32 2147483647, %v455
    %vm487 = vcmp.eq.f32.partialorder %v486, 8.507059e+37
    %v488 = vand.u32 %v455, 2147483648
    %v489 = vor.u32 1.1754944e-38, %v488
    %v490 = vsel %vm487, %v489, %v485
    %v491 = vmul.f32 1.0, %v490
    %v492 = vrcp.pop %v456
    %v493 = vmul.f32 %v456, %v492
    %v494 = vsub.f32 1.0, %v493
    %v495 = vmul.f32 %v492, %v494
    %v496 = vadd.f32 %v492, %v495
    %vm497 = vweird.f32 %v456
    %vm498 = vweird.f32 %v492
    %vm499 = vmor %vm497, %vm498
    %v500 = vsel %vm499, %v492, %v496
    %v501 = vand.u32 2147483647, %v456
    %vm502 = vcmp.eq.f32.partialorder %v501, 8.507059e+37
    %v503 = vand.u32 %v456, 2147483648
    %v504 = vor.u32 1.1754944e-38, %v503
    %v505 = vsel %vm502, %v504, %v500
    %v506 = vmul.f32 1.0, %v505
    %v507 = vrcp.pop %v457
    %v508 = vmul.f32 %v457, %v507
    %v509 = vsub.f32 1.0, %v508
    %v510 = vmul.f32 %v507, %v509
    %v511 = vadd.f32 %v507, %v510
    %vm512 = vweird.f32 %v457
    %vm513 = vweird.f32 %v507
    %vm514 = vmor %vm512, %vm513
    %v515 = vsel %vm514, %v507, %v511
    %v516 = vand.u32 2147483647, %v457
    %vm517 = vcmp.eq.f32.partialorder %v516, 8.507059e+37
    %v518 = vand.u32 %v457, 2147483648
    %v519 = vor.u32 1.1754944e-38, %v518
    %v520 = vsel %vm517, %v519, %v515
    %v521 = vmul.f32 1.0, %v520
    %v522 = vrcp.pop %v458
    %v523 = vmul.f32 %v458, %v522
    %v524 = vsub.f32 1.0, %v523
    %v525 = vmul.f32 %v522, %v524
    %v526 = vadd.f32 %v522, %v525
    %vm527 = vweird.f32 %v458
    %vm528 = vweird.f32 %v522
    %vm529 = vmor %vm527, %vm528
    %v530 = vsel %vm529, %v522, %v526
    %v531 = vand.u32 2147483647, %v458
    %vm532 = vcmp.eq.f32.partialorder %v531, 8.507059e+37
    %v533 = vand.u32 %v458, 2147483648
    %v534 = vor.u32 1.1754944e-38, %v533
    %v535 = vsel %vm532, %v534, %v530
    %v536 = vmul.f32 1.0, %v535
    %v537 = vrcp.pop %v459
    %v538 = vmul.f32 %v459, %v537
    %v539 = vsub.f32 1.0, %v538
    %v540 = vmul.f32 %v537, %v539
    %v541 = vadd.f32 %v537, %v540
    %vm542 = vweird.f32 %v459
    %vm543 = vweird.f32 %v537
    %vm544 = vmor %vm542, %vm543
    %v545 = vsel %vm544, %v537, %v541
    %v546 = vand.u32 2147483647, %v459
    %vm547 = vcmp.eq.f32.partialorder %v546, 8.507059e+37
    %v548 = vand.u32 %v459, 2147483648
    %v549 = vor.u32 1.1754944e-38, %v548
    %v550 = vsel %vm547, %v549, %v545
    %v551 = vmul.f32 1.0, %v550
    %v552 = vrcp.pop %v460
    %v553 = vmul.f32 %v460, %v552
    %v554 = vsub.f32 1.0, %v553
    %v555 = vmul.f32 %v552, %v554
    %v556 = vadd.f32 %v552, %v555
    %vm557 = vweird.f32 %v460
    %vm558 = vweird.f32 %v552
    %vm559 = vmor %vm557, %vm558
    %v560 = vsel %vm559, %v552, %v556
    %v561 = vand.u32 2147483647, %v460
    %vm562 = vcmp.eq.f32.partialorder %v561, 8.507059e+37
    %v563 = vand.u32 %v460, 2147483648
    %v564 = vor.u32 1.1754944e-38, %v563
    %v565 = vsel %vm562, %v564, %v560
    %v566 = vmul.f32 1.0, %v565
    %v567 = vrcp.pop %v461
    %v568 = vmul.f32 %v461, %v567
    %v569 = vsub.f32 1.0, %v568
    %v570 = vmul.f32 %v567, %v569
    %v571 = vadd.f32 %v567, %v570
    %vm572 = vweird.f32 %v461
    %vm573 = vweird.f32 %v567
    %vm574 = vmor %vm572, %vm573
    %v575 = vsel %vm574, %v567, %v571
    %v576 = vand.u32 2147483647, %v461
    %vm577 = vcmp.eq.f32.partialorder %v576, 8.507059e+37
    %v578 = vand.u32 %v461, 2147483648
    %v579 = vor.u32 1.1754944e-38, %v578
    %v580 = vsel %vm577, %v579, %v575
    %v581 = vmul.f32 1.0, %v580
    %v582 = vsel %vm170, %v476, 0.0
    %v583 = vsel %vm170, %v491, 0.0
    %v584 = vadd.f32 %v582, %v583
    %v585 = vsel %vm170, %v506, 0.0
    %v586 = vadd.f32 %v584, %v585
    %v587 = vsel %vm170, %v521, 0.0
    %v588 = vadd.f32 %v586, %v587
    %v589 = vsel %vm170, %v536, 0.0
    %v590 = vadd.f32 %v588, %v589
    %v591 = vsel %vm170, %v551, 0.0
    %v592 = vadd.f32 %v590, %v591
    %v593 = vsel %vm170, %v566, 0.0
    %v594 = vadd.f32 %v592, %v593
    %vm595 = vcmask 6144
    %v596 = vsel %vm595, %v581, 0.0
    %v597 = vadd.f32 %v594, %v596
    %598 = vadd.xlane.f32.xlu0 %v597
    %v599 = vpop.xlane.xlu0 %598
    %v600 = vrot.slane %v599, 4
    %v601 = vadd.f32 %v599, %v600
    %v602 = vrot.slane %v601, 2
    %v603 = vadd.f32 %v601, %v602
    %v604 = vrot.slane %v603, 1
    %v605 = vadd.f32 %v603, %v604
    %s606 = vtos %v605
    %v607 = vadd.f32 %v438, 1.0
    %v608 = vadd.f32 %v440, 1.0
    %v609 = vadd.f32 %v442, 1.0
    %v610 = vadd.f32 %v444, 1.0
    %v611 = vadd.f32 %v446, 1.0
    %v612 = vadd.f32 %v448, 1.0
    %v613 = vadd.f32 %v450, 1.0
    %v614 = vadd.f32 %v453, 1.0
    %v615 = vrcp.pop %v607
    %v616 = vmul.f32 %v607, %v615
    %v617 = vsub.f32 1.0, %v616
    %v618 = vmul.f32 %v615, %v617
    %v619 = vadd.f32 %v615, %v618
    %vm620 = vweird.f32 %v607
    %vm621 = vweird.f32 %v615
    %vm622 = vmor %vm620, %vm621
    %v623 = vsel %vm622, %v615, %v619
    %v624 = vand.u32 2147483647, %v607
    %vm625 = vcmp.eq.f32.partialorder %v624, 8.507059e+37
    %v626 = vand.u32 %v607, 2147483648
    %v627 = vor.u32 1.1754944e-38, %v626
    %v628 = vsel %vm625, %v627, %v623
    %v629 = vmul.f32 1.0, %v628
    %v630 = vrcp.pop %v608
    %v631 = vmul.f32 %v608, %v630
    %v632 = vsub.f32 1.0, %v631
    %v633 = vmul.f32 %v630, %v632
    %v634 = vadd.f32 %v630, %v633
    %vm635 = vweird.f32 %v608
    %vm636 = vweird.f32 %v630
    %vm637 = vmor %vm635, %vm636
    %v638 = vsel %vm637, %v630, %v634
    %v639 = vand.u32 2147483647, %v608
    %vm640 = vcmp.eq.f32.partialorder %v639, 8.507059e+37
    %v641 = vand.u32 %v608, 2147483648
    %v642 = vor.u32 1.1754944e-38, %v641
    %v643 = vsel %vm640, %v642, %v638
    %v644 = vmul.f32 1.0, %v643
    %v645 = vrcp.pop %v609
    %v646 = vmul.f32 %v609, %v645
    %v647 = vsub.f32 1.0, %v646
    %v648 = vmul.f32 %v645, %v647
    %v649 = vadd.f32 %v645, %v648
    %vm650 = vweird.f32 %v609
    %vm651 = vweird.f32 %v645
    %vm652 = vmor %vm650, %vm651
    %v653 = vsel %vm652, %v645, %v649
    %v654 = vand.u32 2147483647, %v609
    %vm655 = vcmp.eq.f32.partialorder %v654, 8.507059e+37
    %v656 = vand.u32 %v609, 2147483648
    %v657 = vor.u32 1.1754944e-38, %v656
    %v658 = vsel %vm655, %v657, %v653
    %v659 = vmul.f32 1.0, %v658
    %v660 = vrcp.pop %v610
    %v661 = vmul.f32 %v610, %v660
    %v662 = vsub.f32 1.0, %v661
    %v663 = vmul.f32 %v660, %v662
    %v664 = vadd.f32 %v660, %v663
    %vm665 = vweird.f32 %v610
    %vm666 = vweird.f32 %v660
    %vm667 = vmor %vm665, %vm666
    %v668 = vsel %vm667, %v660, %v664
    %v669 = vand.u32 2147483647, %v610
    %vm670 = vcmp.eq.f32.partialorder %v669, 8.507059e+37
    %v671 = vand.u32 %v610, 2147483648
    %v672 = vor.u32 1.1754944e-38, %v671
    %v673 = vsel %vm670, %v672, %v668
    %v674 = vmul.f32 1.0, %v673
    %v675 = vrcp.pop %v611
    %v676 = vmul.f32 %v611, %v675
    %v677 = vsub.f32 1.0, %v676
    %v678 = vmul.f32 %v675, %v677
    %v679 = vadd.f32 %v675, %v678
    %vm680 = vweird.f32 %v611
    %vm681 = vweird.f32 %v675
    %vm682 = vmor %vm680, %vm681
    %v683 = vsel %vm682, %v675, %v679
    %v684 = vand.u32 2147483647, %v611
    %vm685 = vcmp.eq.f32.partialorder %v684, 8.507059e+37
    %v686 = vand.u32 %v611, 2147483648
    %v687 = vor.u32 1.1754944e-38, %v686
    %v688 = vsel %vm685, %v687, %v683
    %v689 = vmul.f32 1.0, %v688
    %v690 = vrcp.pop %v612
    %v691 = vmul.f32 %v612, %v690
    %v692 = vsub.f32 1.0, %v691
    %v693 = vmul.f32 %v690, %v692
    %v694 = vadd.f32 %v690, %v693
    %vm695 = vweird.f32 %v612
    %vm696 = vweird.f32 %v690
    %vm697 = vmor %vm695, %vm696
    %v698 = vsel %vm697, %v690, %v694
    %v699 = vand.u32 2147483647, %v612
    %vm700 = vcmp.eq.f32.partialorder %v699, 8.507059e+37
    %v701 = vand.u32 %v612, 2147483648
    %v702 = vor.u32 1.1754944e-38, %v701
    %v703 = vsel %vm700, %v702, %v698
    %v704 = vmul.f32 1.0, %v703
    %v705 = vrcp.pop %v613
    %v706 = vmul.f32 %v613, %v705
    %v707 = vsub.f32 1.0, %v706
    %v708 = vmul.f32 %v705, %v707
    %v709 = vadd.f32 %v705, %v708
    %vm710 = vweird.f32 %v613
    %vm711 = vweird.f32 %v705
    %vm712 = vmor %vm710, %vm711
    %v713 = vsel %vm712, %v705, %v709
    %v714 = vand.u32 2147483647, %v613
    %vm715 = vcmp.eq.f32.partialorder %v714, 8.507059e+37
    %v716 = vand.u32 %v613, 2147483648
    %v717 = vor.u32 1.1754944e-38, %v716
    %v718 = vsel %vm715, %v717, %v713
    %v719 = vmul.f32 1.0, %v718
    %v720 = vrcp.pop %v614
    %v721 = vmul.f32 %v614, %v720
    %v722 = vsub.f32 1.0, %v721
    %v723 = vmul.f32 %v720, %v722
    %v724 = vadd.f32 %v720, %v723
    %vm725 = vweird.f32 %v614
    %vm726 = vweird.f32 %v720
    %vm727 = vmor %vm725, %vm726
    %v728 = vsel %vm727, %v720, %v724
    %v729 = vand.u32 2147483647, %v614
    %vm730 = vcmp.eq.f32.partialorder %v729, 8.507059e+37
    %v731 = vand.u32 %v614, 2147483648
    %v732 = vor.u32 1.1754944e-38, %v731
    %v733 = vsel %vm730, %v732, %v728
    %v734 = vmul.f32 1.0, %v733
    %v735 = vsel %vm170, %v629, 0.0
    %v736 = vsel %vm170, %v644, 0.0
    %v737 = vadd.f32 %v735, %v736
    %v738 = vsel %vm170, %v659, 0.0
    %v739 = vadd.f32 %v737, %v738
    %v740 = vsel %vm170, %v674, 0.0
    %v741 = vadd.f32 %v739, %v740
    %v742 = vsel %vm170, %v689, 0.0
    %v743 = vadd.f32 %v741, %v742
    %v744 = vsel %vm170, %v704, 0.0
    %v745 = vadd.f32 %v743, %v744
    %v746 = vsel %vm170, %v719, 0.0
    %v747 = vadd.f32 %v745, %v746
    %v748 = vsel %vm595, %v734, 0.0
    %v749 = vadd.f32 %v747, %v748
    %750 = vadd.xlane.f32.xlu0 %v749
    %v751 = vpop.xlane.xlu0 %750
    %v752 = vrot.slane %v751, 4
    %v753 = vadd.f32 %v751, %v752
    %v754 = vrot.slane %v753, 2
    %v755 = vadd.f32 %v753, %v754
    %v756 = vrot.slane %v755, 1
    %v757 = vadd.f32 %v755, %v756
    %s758 = vtos %v757
    %s759 = sadd.f32 %s606, %s758
    %s760 = scalar_lea.smem [#allocation7], 0
    %761 = sst [smem:[%s760]] %s243
    %s762 = scalar_lea.smem [#allocation7], 1
    %763 = sst [smem:[%s762]] %s308
    %s764 = scalar_lea.smem [#allocation7], 2
    %765 = sst [smem:[%s764]] %s759
    // Predicated region
    $region18: #{sce_loss_cauchy.1} parent=1 // pred_check
      _
    $region19: #{sce_loss_cauchy.1} parent=1 // pred_check_branch
      %767 = sbr.rel (0) target = $region21
    $region20: #{sce_loss_cauchy.1} parent=1 // pred_region
      %769 = vsyncadd [#allocation4], 0
      %s771 = sshll.u32 %s2, 4
      %s772 = int_to_ptr.vmem [resolvable:$true] %s771
      %774 = dma.smem_to_vmem [#allocation7], 16, %s772, [#allocation4]
    $region21: #{sce_loss_cauchy.1} parent=1 // pred_fallthru
      _
    // Predicated region
    $region22: #{sce_loss_cauchy.1} parent=1 // pred_check
      _
    $region23: #{sce_loss_cauchy.1} parent=1 // pred_check_branch
      %776 = sbr.rel (0) target = $region25
    $region24: #{sce_loss_cauchy.1} parent=1 // pred_region
      %778 = dma.done [#allocation4], 16
    $region25: #{sce_loss_cauchy.1} parent=1 // pred_fallthru
      _
    %779 = sfence
    %780 = vsyncpa [#allocation3], 1
    %781 = vsyncpa [#allocation6], 1
    %782 = vsyncpa [#allocation4], 1

</llo_original>
